<compile_context>
chip_gen: v7x
topology: tpu7x:2x2x1
jax: 0.10.0
libtpu: 0.0.40
codegen_flags: <defaults>
</compile_context>

<pallas_src>
import functools

import jax
import jax.numpy as jnp
from jax.experimental import pallas as pl
from jax.experimental.pallas import tpu as pltpu


def _round_up(x, m):
    return (x + m - 1) // m * m


# ----------------------------------------------------------------------------------
# Kernel 1: fully resident weights -- one lane-wide MXU matmul covering all K experts.
# ----------------------------------------------------------------------------------
def _moe_resident_kernel(x_ref, w_ref, ss_ref, *rest, K, nhid_pad, inv_k, has_aw):
    if has_aw:
        aw_ref, o_ref = rest
    else:
        (o_ref,) = rest

    # (bt, ninput) @ (ninput, K*nhid_pad) -- single MXU call, f32 accumulation.
    y = jnp.dot(x_ref[...], w_ref[...], preferred_element_type=jnp.float32)
    # BN affine + Linear bias applied post-matmul in f32 (keeps bf16 weights clean):
    #   row 0 of ss = gamma/sqrt(var+eps), row 1 = (b - mean)*scale + beta
    y = jnp.maximum(y * ss_ref[0:1, :] + ss_ref[1:2, :], 0.0)

    # Weighted expert reduce over static, 128-aligned lane segments (pairwise tree sum).
    if has_aw:
        terms = [aw_ref[:, k:k + 1] * y[:, k * nhid_pad:(k + 1) * nhid_pad]
                 for k in range(K)]
    else:
        terms = [y[:, k * nhid_pad:(k + 1) * nhid_pad] for k in range(K)]
    while len(terms) > 1:
        nxt = [terms[i] + terms[i + 1] for i in range(0, len(terms) - 1, 2)]
        if len(terms) % 2:
            nxt.append(terms[-1])
        terms = nxt
    acc = terms[0]
    if not has_aw:
        acc = acc * inv_k          # mean over experts, compile-time scalar
    o_ref[...] = acc.astype(o_ref.dtype)


# ----------------------------------------------------------------------------------
# Kernel 2: streaming experts -- grid (batch_tiles, K), one expert's weights in VMEM
# at a time, accumulate in a VMEM scratch.  Used when the weight slab is too big to
# keep resident (v7x: 64 MiB VMEM).
# ----------------------------------------------------------------------------------
def _moe_stream_kernel(x_ref, w_ref, ss_ref, *rest, inv_k, has_aw):
    if has_aw:
        aw_ref, o_ref, acc_ref = rest
    else:
        o_ref, acc_ref = rest

    k = pl.program_id(1)

    @pl.when(k == 0)
    def _():
        acc_ref[...] = jnp.zeros_like(acc_ref)

    y = jnp.dot(x_ref[...], w_ref[...], preferred_element_type=jnp.float32)
    y = jnp.maximum(y * ss_ref[0:1, :] + ss_ref[1:2, :], 0.0)

    if has_aw:
        acc_ref[...] += aw_ref[0] * y      # aw block: (1, bt, 1) -> (bt, 1) broadcast
    else:
        acc_ref[...] += y

    @pl.when(k == pl.num_programs(1) - 1)
    def _():
        out = acc_ref[...]
        if not has_aw:
            out = out * inv_k
        o_ref[...] = out.astype(o_ref.dtype)


# ----------------------------------------------------------------------------------
# Parameter fusion -- run ONCE (not per forward call).
# ----------------------------------------------------------------------------------
def prepare_moe_params(params, *, use_bf16=True, eps=1e-5):
    """Fuse BN(eval) + Linear bias into (scale, shift) and concat experts lane-wise."""
    K, nhid, ninput = params["w"].shape
    nhid_pad = _round_up(nhid, 128)                                  # lane alignment

    scale = params["gamma"] / jnp.sqrt(params["running_var"] + eps)  # (K, nhid)
    shift = (params["b"] - params["running_mean"]) * scale + params["beta"]

    w_t = jnp.transpose(params["w"], (0, 2, 1))                      # (K, ninput, nhid)
    if nhid_pad != nhid:
        pad = nhid_pad - nhid
        w_t = jnp.pad(w_t, ((0, 0), (0, 0), (0, pad)))
        scale = jnp.pad(scale, ((0, 0), (0, pad)))
        shift = jnp.pad(shift, ((0, 0), (0, pad)))

    # Column k*nhid_pad + h  == expert k, feature h.
    w_all = jnp.transpose(w_t, (1, 0, 2)).reshape(ninput, K * nhid_pad)
    ss_all = jnp.stack([scale.reshape(K * nhid_pad),
                        shift.reshape(K * nhid_pad)], axis=0).astype(jnp.float32)
    w_all = w_all.astype(jnp.bfloat16 if use_bf16 else jnp.float32)

    return {"w_all": w_all, "ss_all": ss_all, "K": K, "nhid": nhid,
            "nhid_pad": nhid_pad, "ninput": ninput}


def _pick_batch_tile(B):
    if B <= 16:
        bt = max(8, _round_up(B, 8))            # single tile, sublane aligned
    else:
        # >= 2 grid steps (v7x megacore), cap tile at 512 rows (v6e sweet spot).
        bt = min(512, _round_up(pl.cdiv(B, 2), 8))
    return bt, _round_up(B, bt)


# ----------------------------------------------------------------------------------
# Forward
# ----------------------------------------------------------------------------------
def moe_layer_forward(x, prepared, arch_weight=None, *, force_stream=False):
    """
    x:           (B, ninput) float32
    prepared:    output of prepare_moe_params()
    arch_weight: None or (B, 1, K) float32
    returns:     (B, nhid) float32
    """
    B, ninput = x.shape
    K = prepared["K"]
    nhid = prepared["nhid"]
    nhid_pad = prepared["nhid_pad"]
    w_all = prepared["w_all"]
    ss_all = prepared["ss_all"]
    assert ninput == prepared["ninput"]

    has_aw = arch_weight is not None
    itemsize = w_all.dtype.itemsize

    bt, B_pad = _pick_batch_tile(B)
    x_in = x.astype(w_all.dtype)
    if B_pad != B:
        x_in = jnp.pad(x_in, ((0, B_pad - B), (0, 0)))

    aw = None
    if has_aw:
        aw = arch_weight.reshape(B, K).astype(jnp.float32)
        if B_pad != B:
            aw = jnp.pad(aw, ((0, B_pad - B), (0, 0)))

    weight_bytes = ninput * K * nhid_pad * itemsize
    use_stream = force_stream or weight_bytes > (8 << 20)   # keep slab resident if small

    if not use_stream:
        # ------------------------- resident-weights path -------------------------
        grid = (B_pad // bt,)
        in_specs = [
            pl.BlockSpec((bt, ninput), lambda i: (i, 0)),
            pl.BlockSpec((ninput, K * nhid_pad), lambda i: (0, 0),
                         pipeline_mode=pl.Buffered(1)),        # constant-index: 1 buffer
            pl.BlockSpec((2, K * nhid_pad), lambda i: (0, 0),
                         pipeline_mode=pl.Buffered(1)),
        ]
        inputs = [x_in, w_all, ss_all]
        if has_aw:
            in_specs.append(pl.BlockSpec((bt, K), lambda i: (i, 0)))
            inputs.append(aw)

        footprint = (bt * ninput * itemsize * 2          # x (double buffered)
                     + weight_bytes                      # w_all (single buffer)
                     + 8 * K * nhid_pad * 4              # ss_all (sublane-padded)
                     + bt * nhid_pad * 4 * 2             # out (double buffered)
                     + bt * K * nhid_pad * 4             # y intermediate (f32)
                     + bt * nhid_pad * 4                 # acc
                     + (bt * 128 * 4 * 2 if has_aw else 0))
        vmem_limit = int(min(max(2 * footprint, 16 << 20), 48 << 20))

        kernel = functools.partial(_moe_resident_kernel, K=K, nhid_pad=nhid_pad,
                                   inv_k=1.0 / K, has_aw=has_aw)
        out = pl.pallas_call(
            kernel,
            out_shape=jax.ShapeDtypeStruct((B_pad, nhid_pad), jnp.float32),
            grid=grid,
            in_specs=in_specs,
            out_specs=pl.BlockSpec((bt, nhid_pad), lambda i: (i, 0)),
            compiler_params=pltpu.CompilerParams(
                dimension_semantics=("parallel",),
                vmem_limit_bytes=vmem_limit,
            ),
        )(*inputs)
    else:
        # ------------------------- streaming-experts path ------------------------
        grid = (B_pad // bt, K)
        in_specs = [
            pl.BlockSpec((bt, ninput), lambda i, k: (i, 0)),
            pl.BlockSpec((ninput, nhid_pad), lambda i, k: (0, k)),
            pl.BlockSpec((2, nhid_pad), lambda i, k: (0, k)),
        ]
        inputs = [x_in, w_all, ss_all]
        if has_aw:
            aw_t = jnp.transpose(aw, (1, 0)).reshape(K, B_pad, 1)
            in_specs.append(pl.BlockSpec((1, bt, 1), lambda i, k: (k, i, 0)))
            inputs.append(aw_t)

        footprint = (bt * ninput * itemsize * 2
                     + ninput * nhid_pad * itemsize * 2   # one expert's weights, 2 bufs
                     + 8 * nhid_pad * 4 * 2
                     + bt * nhid_pad * 4 * 2              # out
                     + bt * nhid_pad * 4                  # acc scratch
                     + bt * nhid_pad * 4                  # y intermediate
                     + (bt * 128 * 4 * 2 if has_aw else 0))
        vmem_limit = int(min(max(2 * footprint, 16 << 20), 48 << 20))

        kernel = functools.partial(_moe_stream_kernel, inv_k=1.0 / K, has_aw=has_aw)
        out = pl.pallas_call(
            kernel,
            out_shape=jax.ShapeDtypeStruct((B_pad, nhid_pad), jnp.float32),
            grid=grid,
            in_specs=in_specs,
            out_specs=pl.BlockSpec((bt, nhid_pad), lambda i, k: (i, 0)),
            scratch_shapes=[pltpu.VMEM((bt, nhid_pad), jnp.float32)],
            compiler_params=pltpu.CompilerParams(
                dimension_semantics=("parallel", "arbitrary"),
                vmem_limit_bytes=vmem_limit,
            ),
        )(*inputs)

    return out[:B, :nhid]


# ----------------------------------------------------------------------------------
# Pure-JAX reference (mirrors the PyTorch forward, eval mode)
# ----------------------------------------------------------------------------------
def moe_layer_reference(x, params, arch_weight=None):
    eps = 1e-5
    K = params["w"].shape[0]
    outs = []
    for k in range(K):
        s = x @ params["w"][k].T + params["b"][k]
        s = (s - params["running_mean"][k]) / jnp.sqrt(params["running_var"][k] + eps)
        s = s * params["gamma"][k] + params["beta"][k]
        outs.append(jnp.maximum(s, 0.0))
    stacked = jnp.stack(outs, axis=1)                      # (B, K, nhid)
    if arch_weight is None:
        return jnp.mean(stacked, axis=1)
    return jnp.einsum("bok,bkh->boh", arch_weight, stacked)[:, 0, :]


def init_params(key, K, ninput, nhid):
    ks = jax.random.split(key, 6)
    bound = 1.0 / jnp.sqrt(ninput)
    return {
        "w": jax.random.uniform(ks[0], (K, nhid, ninput), jnp.float32, -bound, bound),
        "b": jax.random.uniform(ks[1], (K, nhid), jnp.float32, -bound, bound),
        "gamma": 1.0 + 0.1 * jax.random.normal(ks[2], (K, nhid), jnp.float32),
        "beta": 0.1 * jax.random.normal(ks[3], (K, nhid), jnp.float32),
        "running_mean": 0.05 * jax.random.normal(ks[4], (K, nhid), jnp.float32),
        "running_var": jnp.abs(1.0 + 0.1 * jax.random.normal(ks[5], (K, nhid), jnp.float32)),
    }


if __name__ == "__main__":
    key = jax.random.PRNGKey(0)

    # ---- primary shapes (MOELayer.duplayers = K) -------------------------------
    K, B, ninput, nhid = 4, 8, 32, 128
    k_x, k_p, k_a = jax.random.split(key, 3)
    x = jax.random.normal(k_x, (B, ninput), jnp.float32)
    params = init_params(k_p, K, ninput, nhid)
    arch_weight = jax.nn.softmax(jax.random.normal(k_a, (B, 1, K), jnp.float32), axis=-1)

    prep_f32 = prepare_moe_params(params, use_bf16=False)
    prep_bf16 = prepare_moe_params(params)                  # bf16 operands (default)

    ref_mean = moe_layer_reference(x, params, None)
    ref_w = moe_layer_reference(x, params, arch_weight)

    # 1) resident path, f32, mean and weighted
    out_mean = jax.block_until_ready(moe_layer_forward(x, prep_f32, None))
    out_w = jax.block_until_ready(moe_layer_forward(x, prep_f32, arch_weight))
    assert out_mean.shape == (B, nhid) and out_w.shape == (B, nhid)
    assert jnp.allclose(out_mean, ref_mean, atol=1e-5, rtol=1e-5)
    assert jnp.allclose(out_w, ref_w, atol=1e-5, rtol=1e-5)

    # 2) resident path, bf16 operands (default), f32 accumulate / f32 BN+shift
    out_bf16 = jax.block_until_ready(moe_layer_forward(x, prep_bf16, arch_weight))
    assert jnp.allclose(out_bf16, ref_w, atol=5e-2, rtol=5e-2)

    # 3) streaming-experts path (forced at small size to validate the big-weight path)
    out_s_mean = jax.block_until_ready(moe_layer_forward(x, prep_f32, None, force_stream=True))
    out_s_w = jax.block_until_ready(moe_layer_forward(x, prep_f32, arch_weight, force_stream=True))
    assert jnp.allclose(out_s_mean, ref_mean, atol=1e-5, rtol=1e-5)
    assert jnp.allclose(out_s_w, ref_w, atol=1e-5, rtol=1e-5)

    # 4) non-128-aligned nhid + multi-tile batch (padding / lane-alignment path)
    K2, B2, nin2, nh2 = 3, 20, 48, 72
    k_x2, k_p2, k_a2 = jax.random.split(jax.random.PRNGKey(1), 3)
    x2 = jax.random.normal(k_x2, (B2, nin2), jnp.float32)
    params2 = init_params(k_p2, K2, nin2, nh2)
    aw2 = jax.nn.softmax(jax.random.normal(k_a2, (B2, 1, K2), jnp.float32), axis=-1)
    prep2 = prepare_moe_params(params2, use_bf16=False)
    out2_m = jax.block_until_ready(moe_layer_forward(x2, prep2, None))
    out2_w = jax.block_until_ready(moe_layer_forward(x2, prep2, aw2))
    assert out2_m.shape == (B2, nh2) and out2_w.shape == (B2, nh2)
    assert jnp.allclose(out2_m, moe_layer_reference(x2, params2, None), atol=1e-5, rtol=1e-5)
    assert jnp.allclose(out2_w, moe_layer_reference(x2, params2, aw2), atol=1e-5, rtol=1e-5)

    print("KERNEL_OK")
</pallas_src>

<mosaic_0001>
module attributes {stable_mosaic.version = 11 : i64} {
  func.func @_moe_resident_kernel(%arg0: i32, %arg1: memref<8x32xf32, #tpu.memory_space<vmem>>, %arg2: memref<32x512xf32, #tpu.memory_space<vmem>>, %arg3: memref<2x512xf32, #tpu.memory_space<vmem>>, %arg4: memref<8x128xf32, #tpu.memory_space<vmem>>) attributes {dimension_semantics = [#tpu.dimension_semantics<parallel>], iteration_bounds = array<i64: 1>, scalar_prefetch = 0 : i64, scratch_operands = 0 : i64, tpu.core_type = #tpu.core_type<tc>, window_params = [{transform_indices = @transform_0, window_bounds = array<i64: 8, 32>}, {pipeline_mode = #tpu.pipeline_mode<synchronous>, transform_indices = @transform_1, window_bounds = array<i64: 32, 512>}, {pipeline_mode = #tpu.pipeline_mode<synchronous>, transform_indices = @transform_2, window_bounds = array<i64: 2, 512>}, {transform_indices = @transform_3, window_bounds = array<i64: 8, 128>}]} {
    %c0 = arith.constant 0 : index
    %c0_0 = arith.constant 0 : index
    %0 = vector.load %arg1[%c0, %c0_0] : memref<8x32xf32, #tpu.memory_space<vmem>>, vector<8x32xf32>
    %c0_1 = arith.constant 0 : index
    %c0_2 = arith.constant 0 : index
    %1 = vector.load %arg2[%c0_1, %c0_2] : memref<32x512xf32, #tpu.memory_space<vmem>>, vector<32x512xf32>
    %cst = arith.constant dense<0.000000e+00> : vector<8x512xf32>
    %2 = tpu.matmul %0, %1, %cst {dimension_numbers = #tpu.dot_dimension_numbers<[1], [0], [0], [1], [0, 0, 1, 1], [], []>} : vector<8x32xf32>, vector<32x512xf32>, vector<8x512xf32> -> vector<8x512xf32>
    %c0_3 = arith.constant 0 : index
    %c0_4 = arith.constant 0 : index
    %3 = vector.load %arg3[%c0_3, %c0_4] : memref<2x512xf32, #tpu.memory_space<vmem>>, vector<1x512xf32>
    %4 = vector.broadcast %3 : vector<1x512xf32> to vector<8x512xf32>
    %5 = arith.mulf %2, %4 : vector<8x512xf32>
    %c1 = arith.constant 1 : index
    %c0_5 = arith.constant 0 : index
    %6 = vector.load %arg3[%c1, %c0_5] : memref<2x512xf32, #tpu.memory_space<vmem>>, vector<1x512xf32>
    %7 = vector.broadcast %6 : vector<1x512xf32> to vector<8x512xf32>
    %8 = arith.addf %5, %7 : vector<8x512xf32>
    %cst_6 = arith.constant 0.000000e+00 : f32
    %9 = vector.broadcast %cst_6 : f32 to vector<8x512xf32>
    %10 = arith.maximumf %8, %9 : vector<8x512xf32>
    %11 = vector.extract_strided_slice %10 {offsets = [0, 0], sizes = [8, 128], strides = [1, 1]} : vector<8x512xf32> to vector<8x128xf32>
    %12 = vector.extract_strided_slice %10 {offsets = [0, 128], sizes = [8, 128], strides = [1, 1]} : vector<8x512xf32> to vector<8x128xf32>
    %13 = vector.extract_strided_slice %10 {offsets = [0, 256], sizes = [8, 128], strides = [1, 1]} : vector<8x512xf32> to vector<8x128xf32>
    %14 = vector.extract_strided_slice %10 {offsets = [0, 384], sizes = [8, 128], strides = [1, 1]} : vector<8x512xf32> to vector<8x128xf32>
    %15 = arith.addf %11, %12 : vector<8x128xf32>
    %16 = arith.addf %13, %14 : vector<8x128xf32>
    %17 = arith.addf %15, %16 : vector<8x128xf32>
    %cst_7 = arith.constant 2.500000e-01 : f32
    %18 = vector.broadcast %cst_7 : f32 to vector<8x128xf32>
    %19 = arith.mulf %17, %18 : vector<8x128xf32>
    %c0_8 = arith.constant 0 : index
    %c0_9 = arith.constant 0 : index
    %20 = vector.load %arg4[%c0_8, %c0_9] : memref<8x128xf32, #tpu.memory_space<vmem>>, vector<8x128xf32>
    tpu.vector_store %arg4[%c0_8, %c0_9], %19 {strides = array<i32>} : memref<8x128xf32, #tpu.memory_space<vmem>>, vector<8x128xf32>,
    return
  }
  func.func @transform_0(%arg0: i32) -> (i32, i32) {
    %c0_i32 = arith.constant 0 : i32
    %c0_i32_0 = arith.constant 0 : i32
    return %arg0, %c0_i32 : i32, i32
  }
  func.func @transform_1(%arg0: i32) -> (i32, i32) {
    %c0_i32 = arith.constant 0 : i32
    %c0_i32_0 = arith.constant 0 : i32
    %c0_i32_1 = arith.constant 0 : i32
    return %c0_i32, %c0_i32_0 : i32, i32
  }
  func.func @transform_2(%arg0: i32) -> (i32, i32) {
    %c0_i32 = arith.constant 0 : i32
    %c0_i32_0 = arith.constant 0 : i32
    %c0_i32_1 = arith.constant 0 : i32
    return %c0_i32, %c0_i32_0 : i32, i32
  }
  func.func @transform_3(%arg0: i32) -> (i32, i32) {
    %c0_i32 = arith.constant 0 : i32
    %c0_i32_0 = arith.constant 0 : i32
    return %arg0, %c0_i32 : i32, i32
  }
}

</mosaic_0001>

<llo_original>
// kernel: tpu_custom_call.1
$region0: #{tpu_custom_call.1}
  #allocation0 [shape = 'u32[]', space=smem, size = 0x4, offset = 0x4, fixed_abs, tag = 'smem constant byte address 0x4 - core index']
  #allocation1 [shape = 'u32[144,128]{1,0:T(1,128)}', space=vmem, size = 0x12000, scoped, tag = 'internal scratch']
  %s0 = inlined_call_operand.hbm [shape: f32[8,32], index: 0, kind: input, shape index: {}]
  %s1 = inlined_call_operand.hbm [shape: f32[32,512], index: 1, kind: input, shape index: {}]
  %s2 = inlined_call_operand.hbm [shape: f32[2,512], index: 2, kind: input, shape index: {}]
  %s3 = inlined_call_operand.hbm [shape: f32[8,128], index: 3, kind: output, shape index: {}]
  %s4 = sld [smem:[#allocation0]]
  $region34: #{tpu_custom_call.1} parent=0
    _
  %s6 = ssub.s32 1, %s4
  %s7 = scalar_select 0, %s6, %s4
  $region1: #{tpu_custom_call.1} parent=0
    #allocation2 [shape = 'u8[4096]{0}', space=vmem, size = 0x1000, scoped, tag = 'input window, operand 0, single buffered']
    #allocation3 [shape = 's32[1]{0}', space=sflag, size = 0x4, scoped, tag = 'scoped memory for tpu_custom_call.1']
    #allocation4 [shape = 's32[1]{0}', space=sflag, size = 0x4, scoped, tag = 'scoped memory for tpu_custom_call.1']
    #allocation5 [shape = 'u8[65536]{0}', space=vmem, size = 0x10000, scoped, tag = 'input window, operand 1, single buffered']
    #allocation6 [shape = 's32[1]{0}', space=sflag, size = 0x4, scoped, tag = 'scoped memory for tpu_custom_call.1']
    #allocation7 [shape = 'u8[4096]{0}', space=vmem, size = 0x1000, scoped, tag = 'input window, operand 2, single buffered']
    #allocation8 [shape = 'u8[4096]{0}', space=vmem, size = 0x1000, scoped, tag = 'output window, operand 0, single buffered']
    %8 = vsyncpa [#allocation3], 0
    %9 = vsyncpa [#allocation6], 0
    %10 = vsyncpa [#allocation4], 0
    // Predicated region
    $region2: #{tpu_custom_call.1} parent=1 // pred_check
      _
    $region3: #{tpu_custom_call.1} parent=1 // pred_check_branch
      %12 = sbr.rel (0) target = $region5
    $region4: #{tpu_custom_call.1} parent=1 // pred_region
      %s14 = ssub.s32 128, 128
      %15 = vsyncadd [#allocation3], %s14
      %s17 = sshll.u32 [#allocation2], 4
      %s18 = int_to_ptr.vmem [resolvable:$true] %s17
      %20 = dma.hbm_to_vmem [thread:$0]  %s0, 128, %s18, [#allocation3]
    $region5: #{tpu_custom_call.1} parent=1 // pred_fallthru
      _
    // Predicated region
    $region6: #{tpu_custom_call.1} parent=1 // pred_check
      _
    $region7: #{tpu_custom_call.1} parent=1 // pred_check_branch
      %22 = sbr.rel (0) target = $region9
    $region8: #{tpu_custom_call.1} parent=1 // pred_region
      %s24 = ssub.s32 2048, 2048
      %25 = vsyncadd [#allocation6], %s24
      %s26 = sshll.u32 [#allocation5], 4
      %s27 = int_to_ptr.vmem [resolvable:$true] %s26
      %32 = dma.hbm_to_vmem [thread:$0]  %s1, 2048, %s27, [#allocation6], 512, 512, 32
    $region9: #{tpu_custom_call.1} parent=1 // pred_fallthru
      _
    // Predicated region
    $region10: #{tpu_custom_call.1} parent=1 // pred_check
      _
    $region11: #{tpu_custom_call.1} parent=1 // pred_check_branch
      %34 = sbr.rel (0) target = $region13
    $region12: #{tpu_custom_call.1} parent=1 // pred_region
      %s36 = ssub.s32 128, 128
      %37 = vsyncadd [#allocation6], %s36
      %s39 = sshll.u32 [#allocation7], 4
      %s40 = int_to_ptr.vmem [resolvable:$true] %s39
      %42 = dma.hbm_to_vmem [thread:$0]  %s2, 128, %s40, [#allocation6]
    $region13: #{tpu_custom_call.1} parent=1 // pred_fallthru
      _
    // Predicated region
    $region14: #{tpu_custom_call.1} parent=1 // pred_check
      _
    $region15: #{tpu_custom_call.1} parent=1 // pred_check_branch
      %44 = sbr.rel (0) target = $region17
    $region16: #{tpu_custom_call.1} parent=1 // pred_region
      %45 = dma.done [#allocation3], 128
    $region17: #{tpu_custom_call.1} parent=1 // pred_fallthru
      _
    // Predicated region
    $region18: #{tpu_custom_call.1} parent=1 // pred_check
      _
    $region19: #{tpu_custom_call.1} parent=1 // pred_check_branch
      %47 = sbr.rel (0) target = $region21
    $region20: #{tpu_custom_call.1} parent=1 // pred_region
      %48 = dma.done [#allocation6], 2048
    $region21: #{tpu_custom_call.1} parent=1 // pred_fallthru
      _
    // Predicated region
    $region22: #{tpu_custom_call.1} parent=1 // pred_check
      _
    $region23: #{tpu_custom_call.1} parent=1 // pred_check_branch
      %50 = sbr.rel (0) target = $region25
    $region24: #{tpu_custom_call.1} parent=1 // pred_region
      %51 = dma.done [#allocation6], 128
    $region25: #{tpu_custom_call.1} parent=1 // pred_fallthru
      _
    %v52 = vld [vmem:[#allocation2] sm:$0xff]
    %v53 = vld [vmem:[#allocation5] sm:$0xff]
    %v54 = vld [vmem:[#allocation5 + $0x8] sm:$0xff]
    %v55 = vld [vmem:[#allocation5 + $0x10] sm:$0xff]
    %v56 = vld [vmem:[#allocation5 + $0x18] sm:$0xff]
    %v57 = vld [vmem:[#allocation5 + $0x20] sm:$0xff]
    %v58 = vld [vmem:[#allocation5 + $0x28] sm:$0xff]
    %v59 = vld [vmem:[#allocation5 + $0x30] sm:$0xff]
    %v60 = vld [vmem:[#allocation5 + $0x38] sm:$0xff]
    %v61 = vld [vmem:[#allocation5 + $0x40] sm:$0xff]
    %v62 = vld [vmem:[#allocation5 + $0x48] sm:$0xff]
    %v63 = vld [vmem:[#allocation5 + $0x50] sm:$0xff]
    %v64 = vld [vmem:[#allocation5 + $0x58] sm:$0xff]
    %v65 = vld [vmem:[#allocation5 + $0x60] sm:$0xff]
    %v66 = vld [vmem:[#allocation5 + $0x68] sm:$0xff]
    %v67 = vld [vmem:[#allocation5 + $0x70] sm:$0xff]
    %v68 = vld [vmem:[#allocation5 + $0x78] sm:$0xff]
    %vm69 = vcmask 261120
    %v71 = vsel %vm69, %v52, 0
    %73 = vmatprep.subr.mxu0 %v54
    %74 = vmatpush1.msra.mxu0 %v53
    %75 = vmatprep.subr.mxu0 %v58
    %76 = vmatpush1.msra.mxu0 %v57
    %77 = vmatprep.subr.mxu0 %v62
    %78 = vmatpush1.msra.mxu0 %v61
    %79 = vmatprep.subr.mxu0 %v66
    %80 = vmatpush1.msra.mxu0 %v65
    %81 = vmatprep.subr.mxu0 0.0
    %82 = vmatpush1.msra.mxu0 0.0
    %83 = vmatprep.subr.mxu0 0.0
    %84 = vmatpush1.msra.mxu0 0.0
    %85 = vmatprep.subr.mxu0 0.0
    %86 = vmatpush1.msra.mxu0 0.0
    %87 = vmatprep.subr.mxu0 0.0
    %88 = vmatpush1.msra.mxu0 0.0
    %89 = vmatprep.subr.mxu0 0.0
    %90 = vmatpush1.msra.mxu0 0.0
    %91 = vmatprep.subr.mxu0 0.0
    %92 = vmatpush1.msra.mxu0 0.0
    %93 = vmatprep.subr.mxu0 0.0
    %94 = vmatpush1.msra.mxu0 0.0
    %95 = vmatprep.subr.mxu0 0.0
    %96 = vmatpush1.msra.mxu0 0.0
    %97 = vmatprep.subr.mxu0 0.0
    %98 = vmatpush1.msra.mxu0 0.0
    %99 = vmatprep.subr.mxu0 0.0
    %100 = vmatpush1.msra.mxu0 0.0
    %101 = vmatprep.subr.mxu0 0.0
    %102 = vmatpush1.msra.mxu0 0.0
    %103 = vmatprep.subr.mxu0 0.0
    %104 = vmatpush1.msra.mxu0 0.0
    %105 = vmatprep.subr.mxu0 0.0
    %106 = vmatpush1.msra.mxu0 0.0
    %107 = vmatprep.subr.mxu0 0.0
    %108 = vmatpush1.msra.mxu0 0.0
    %109 = vmatprep.subr.mxu0 0.0
    %110 = vmatpush1.msra.mxu0 0.0
    %111 = vmatprep.subr.mxu0 0.0
    %112 = vmatpush1.msra.mxu0 0.0
    %113 = vmatprep.subr.mxu0 0.0
    %114 = vmatpush1.msra.mxu0 0.0
    %115 = vmatprep.subr.mxu0 0.0
    %116 = vmatpush1.msra.mxu0 0.0
    %117 = vmatprep.subr.mxu0 0.0
    %118 = vmatpush1.msra.mxu0 0.0
    %119 = vmatprep.subr.mxu0 0.0
    %120 = vmatpush1.msra.mxu0 0.0
    %121 = vmatprep.subr.mxu0 0.0
    %122 = vmatpush1.msra.mxu0 0.0
    %123 = vmatprep.subr.mxu0 0.0
    %124 = vmatpush1.msra.mxu0 0.0
    %125 = vmatprep.subr.mxu0 0.0
    %126 = vmatpush1.msra.mxu0 0.0
    %127 = vmatprep.subr.mxu0 0.0
    %128 = vmatpush1.msra.mxu0 0.0
    %129 = vmatprep.subr.mxu0 0.0
    %130 = vmatpush1.msra.mxu0 0.0
    %131 = vmatprep.subr.mxu0 0.0
    %132 = vmatpush1.msra.mxu0 0.0
    %133 = vmatprep.subr.mxu0 0.0
    %134 = vmatpush1.msra.mxu0 0.0
    %135 = vmatprep.subr.mxu0 0.0
    %136 = vmatpush1.msra.mxu0 0.0
    %137 = vmatprep.mubr.f32.mxu0 0.0
    %138 = vmatmul.mubr.f32.gmra.mrb[0].mxu0 %v71
    %v139 = vpop.f32.mrb[0].mxu0
    %v140 = vadd.f32 0.0, %v139
    %v141 = vpop.f32.mrb[0].mxu0
    %v142 = vadd.f32 0.0, %v141
    %143 = vdwg.mxu0
    %144 = vmatprep.subr.mxu0 %v56
    %145 = vmatpush1.msra.mxu0 %v55
    %146 = vmatprep.subr.mxu0 %v60
    %147 = vmatpush1.msra.mxu0 %v59
    %148 = vmatprep.subr.mxu0 %v64
    %149 = vmatpush1.msra.mxu0 %v63
    %150 = vmatprep.subr.mxu0 %v68
    %151 = vmatpush1.msra.mxu0 %v67
    %152 = vmatprep.subr.mxu0 0.0
    %153 = vmatpush1.msra.mxu0 0.0
    %154 = vmatprep.subr.mxu0 0.0
    %155 = vmatpush1.msra.mxu0 0.0
    %156 = vmatprep.subr.mxu0 0.0
    %157 = vmatpush1.msra.mxu0 0.0
    %158 = vmatprep.subr.mxu0 0.0
    %159 = vmatpush1.msra.mxu0 0.0
    %160 = vmatprep.subr.mxu0 0.0
    %161 = vmatpush1.msra.mxu0 0.0
    %162 = vmatprep.subr.mxu0 0.0
    %163 = vmatpush1.msra.mxu0 0.0
    %164 = vmatprep.subr.mxu0 0.0
    %165 = vmatpush1.msra.mxu0 0.0
    %166 = vmatprep.subr.mxu0 0.0
    %167 = vmatpush1.msra.mxu0 0.0
    %168 = vmatprep.subr.mxu0 0.0
    %169 = vmatpush1.msra.mxu0 0.0
    %170 = vmatprep.subr.mxu0 0.0
    %171 = vmatpush1.msra.mxu0 0.0
    %172 = vmatprep.subr.mxu0 0.0
    %173 = vmatpush1.msra.mxu0 0.0
    %174 = vmatprep.subr.mxu0 0.0
    %175 = vmatpush1.msra.mxu0 0.0
    %176 = vmatprep.subr.mxu0 0.0
    %177 = vmatpush1.msra.mxu0 0.0
    %178 = vmatprep.subr.mxu0 0.0
    %179 = vmatpush1.msra.mxu0 0.0
    %180 = vmatprep.subr.mxu0 0.0
    %181 = vmatpush1.msra.mxu0 0.0
    %182 = vmatprep.subr.mxu0 0.0
    %183 = vmatpush1.msra.mxu0 0.0
    %184 = vmatprep.subr.mxu0 0.0
    %185 = vmatpush1.msra.mxu0 0.0
    %186 = vmatprep.subr.mxu0 0.0
    %187 = vmatpush1.msra.mxu0 0.0
    %188 = vmatprep.subr.mxu0 0.0
    %189 = vmatpush1.msra.mxu0 0.0
    %190 = vmatprep.subr.mxu0 0.0
    %191 = vmatpush1.msra.mxu0 0.0
    %192 = vmatprep.subr.mxu0 0.0
    %193 = vmatpush1.msra.mxu0 0.0
    %194 = vmatprep.subr.mxu0 0.0
    %195 = vmatpush1.msra.mxu0 0.0
    %196 = vmatprep.subr.mxu0 0.0
    %197 = vmatpush1.msra.mxu0 0.0
    %198 = vmatprep.subr.mxu0 0.0
    %199 = vmatpush1.msra.mxu0 0.0
    %200 = vmatprep.subr.mxu0 0.0
    %201 = vmatpush1.msra.mxu0 0.0
    %202 = vmatprep.subr.mxu0 0.0
    %203 = vmatpush1.msra.mxu0 0.0
    %204 = vmatprep.subr.mxu0 0.0
    %205 = vmatpush1.msra.mxu0 0.0
    %206 = vmatprep.subr.mxu0 0.0
    %207 = vmatpush1.msra.mxu0 0.0
    %208 = vmatprep.mubr.f32.mxu0 0.0
    %209 = vmatmul.mubr.f32.gmra.mrb[0].mxu0 %v71
    %v210 = vpop.f32.mrb[0].mxu0
    %v211 = vadd.f32 0.0, %v210
    %v212 = vpop.f32.mrb[0].mxu0
    %v213 = vadd.f32 0.0, %v212
    %214 = vdwg.mxu0
    %v215 = vld [vmem:[#allocation7] ss:$2 sm:$0xf]
    %v217 = vlaneseq
    %v218 = vshrl.u32 %v217, 7
    %v219 = vsub.s32 0, %v218
    %v220 = vrot.slane %v215, %v219
    %v221 = vlaneseq
    %v222 = vshrl.u32 %v221, 7
    %v223 = vsub.s32 1, %v222
    %v224 = vrot.slane %v215, %v223
    %v225 = vlaneseq
    %v226 = vshrl.u32 %v225, 7
    %v227 = vsub.s32 2, %v226
    %v228 = vrot.slane %v215, %v227
    %v229 = vlaneseq
    %v230 = vshrl.u32 %v229, 7
    %v231 = vsub.s32 3, %v230
    %v232 = vrot.slane %v215, %v231
    %v237 = vmul.f32 %v140, %v220
    %v238 = vmul.f32 %v142, %v224
    %v239 = vmul.f32 %v211, %v228
    %v240 = vmul.f32 %v213, %v232
    %s241 = scalar_lea.vmem [#allocation7], 1
    %v242 = vld [vmem:[%s241] ss:$2 sm:$0xf]
    %v244 = vlaneseq
    %v245 = vshrl.u32 %v244, 7
    %v246 = vsub.s32 0, %v245
    %v247 = vrot.slane %v242, %v246
    %v248 = vlaneseq
    %v249 = vshrl.u32 %v248, 7
    %v250 = vsub.s32 1, %v249
    %v251 = vrot.slane %v242, %v250
    %v252 = vlaneseq
    %v253 = vshrl.u32 %v252, 7
    %v254 = vsub.s32 2, %v253
    %v255 = vrot.slane %v242, %v254
    %v256 = vlaneseq
    %v257 = vshrl.u32 %v256, 7
    %v258 = vsub.s32 3, %v257
    %v259 = vrot.slane %v242, %v258
    %v264 = vadd.f32 %v237, %v247
    %v265 = vadd.f32 %v238, %v251
    %v266 = vadd.f32 %v239, %v255
    %v267 = vadd.f32 %v240, %v259
    %v268 = vmax.f32 %v264, 0.0
    %v269 = vmax.f32 %v265, 0.0
    %v270 = vmax.f32 %v266, 0.0
    %v271 = vmax.f32 %v267, 0.0
    %v272 = vadd.f32 %v268, %v269
    %v273 = vadd.f32 %v270, %v271
    %v274 = vadd.f32 %v272, %v273
    %v275 = vmul.f32 %v274, 0.25
    %276 = vst [vmem:[#allocation8] sm:$0xff] %v275
    // Predicated region
    $region26: #{tpu_custom_call.1} parent=1 // pred_check
      _
    $region27: #{tpu_custom_call.1} parent=1 // pred_check_branch
      %278 = sbr.rel (0) target = $region29
    $region28: #{tpu_custom_call.1} parent=1 // pred_region
      %s280 = ssub.s32 128, 128
      %281 = vsyncadd [#allocation4], %s280
      %s283 = sshll.u32 [#allocation8], 4
      %s284 = int_to_ptr.vmem [resolvable:$true] %s283
      %286 = dma.vmem_to_hbm [thread:$0]  %s284, 128, %s3, [#allocation4]
    $region29: #{tpu_custom_call.1} parent=1 // pred_fallthru
      _
    // Predicated region
    $region30: #{tpu_custom_call.1} parent=1 // pred_check
      _
    $region31: #{tpu_custom_call.1} parent=1 // pred_check_branch
      %288 = sbr.rel (0) target = $region33
    $region32: #{tpu_custom_call.1} parent=1 // pred_region
      %289 = dma.done [#allocation4], 128
    $region33: #{tpu_custom_call.1} parent=1 // pred_fallthru
      _
    %290 = vsyncpa [#allocation3], 1
    %291 = vsyncpa [#allocation6], 1
    %292 = vsyncpa [#allocation4], 1

</llo_original>
